<compile_context>
chip_gen: v7x
topology: tpu7x:2x2x1
jax: 0.10.0
libtpu: 0.0.40
codegen_flags: <defaults>
</compile_context>

<pallas_src>
import functools
import math

import jax
import jax.numpy as jnp
from jax.experimental import pallas as pl
from jax.experimental.pallas import tpu as pltpu


def _residual_conv_bn_kernel(x2_ref, w_ref, g_ref, b_ref, out_ref, *, eps, inv_count):
    # x2_ref : (K*C_in, M)      im2col'd input, M = N*T_out*V (lane axis)
    # w_ref  : (block_c, K*C_in) conv weight block (im2col layout)
    # g_ref  : (block_c, 1)      BN gamma block
    # b_ref  : (block_c, 1)      BN beta block
    # out_ref: (block_c, M)      normalized output block
    y = jnp.dot(w_ref[...], x2_ref[...], preferred_element_type=jnp.float32)  # (bc, M)

    # BatchNorm2d, training mode: per-channel stats over the full (N, T_out, V) extent,
    # which is exactly the M axis here.  Biased variance, two-pass (numerically safe).
    mean = jnp.sum(y, axis=1, keepdims=True) * inv_count
    centered = y - mean
    var = jnp.sum(centered * centered, axis=1, keepdims=True) * inv_count
    inv_std = jax.lax.rsqrt(var + eps)

    out_ref[...] = (centered * inv_std * g_ref[...] + b_ref[...]).astype(out_ref.dtype)


def residual_conv_forward(x, weight, bias, gamma, beta, *, kernel_size=5, stride=1,
                          eps=1e-5):
    """x: (N, C_in, T, V) NCHW.  weight: (C_out, C_in, K).  Returns (N, C_out, T_out, V).

    `bias` is accepted for API parity but unused: training-mode BatchNorm subtracts the
    per-channel mean, which cancels a per-channel conv bias exactly.
    """
    del bias  # cancelled by train-mode BN mean subtraction
    N, C_in, T, V = x.shape
    C_out = weight.shape[0]
    K = kernel_size
    pad = (K - 1) // 2
    T_pad = T + 2 * pad
    T_out = (T_pad - K) // stride + 1
    M = N * T_out * V
    KC = K * C_in

    # ---- wrapper-side im2col: lane-dense (K*C_in, N*T_out*V) ----
    x_pad = jnp.pad(x, ((0, 0), (0, 0), (pad, pad), (0, 0)))
    taps = [
        jax.lax.slice_in_dim(x_pad, dk, dk + stride * (T_out - 1) + 1, stride, axis=2)
        for dk in range(K)
    ]                                                    # each (N, C_in, T_out, V)
    x2 = jnp.stack(taps, axis=0)                         # (K, N, C_in, T_out, V)
    x2 = jnp.transpose(x2, (0, 2, 1, 3, 4))              # (K, C_in, N, T_out, V)
    x2 = x2.reshape(KC, M).astype(jnp.float32)

    # weight (C_out, C_in, K) -> (C_out, K, C_in) -> (C_out, K*C_in), matching x2 rows
    w2 = jnp.transpose(weight, (0, 2, 1)).reshape(C_out, KC).astype(jnp.float32)
    g2 = gamma.reshape(C_out, 1).astype(jnp.float32)
    b2 = beta.reshape(C_out, 1).astype(jnp.float32)

    # ---- channel-block grid (independent BN groups) ----
    block_c = C_out
    if C_out % 8 == 0:
        for cand in (64, 32, 16, 8):
            if C_out % cand == 0:
                block_c = cand
                break
    grid_c = C_out // block_c

    out2 = pl.pallas_call(
        functools.partial(_residual_conv_bn_kernel, eps=eps, inv_count=1.0 / M),
        out_shape=jax.ShapeDtypeStruct((C_out, M), jnp.float32),
        grid=(grid_c,),
        in_specs=[
            pl.BlockSpec((KC, M), lambda i: (0, 0)),          # full im2col every step
            pl.BlockSpec((block_c, KC), lambda i: (i, 0)),    # weight channel block
            pl.BlockSpec((block_c, 1), lambda i: (i, 0)),     # gamma block
            pl.BlockSpec((block_c, 1), lambda i: (i, 0)),     # beta block
        ],
        out_specs=pl.BlockSpec((block_c, M), lambda i: (i, 0)),
        compiler_params=pltpu.CompilerParams(
            dimension_semantics=("parallel",)),               # channel blocks independent
    )(x2, w2, g2, b2)

    # (C_out, N*T_out*V) -> (N, C_out, T_out, V)
    return jnp.transpose(out2.reshape(C_out, N, T_out, V), (1, 0, 2, 3))


def residual_conv_reference(x, weight, bias, gamma, beta, *, kernel_size=5, stride=1,
                            eps=1e-5):
    """Plain-JAX reference matching nn.Conv2d((k,1)) + nn.BatchNorm2d (train mode)."""
    pad = (kernel_size - 1) // 2
    w4 = weight[..., None]                               # (C_out, C_in, K, 1) OIHW
    dn = jax.lax.conv_dimension_numbers(x.shape, w4.shape, ("NCHW", "OIHW", "NCHW"))
    y = jax.lax.conv_general_dilated(x, w4, window_strides=(stride, 1),
                                     padding=((pad, pad), (0, 0)),
                                     dimension_numbers=dn)
    y = y + bias.reshape(1, -1, 1, 1)
    mean = jnp.mean(y, axis=(0, 2, 3), keepdims=True)
    var = jnp.mean(jnp.square(y - mean), axis=(0, 2, 3), keepdims=True)
    return (y - mean) * jax.lax.rsqrt(var + eps) * gamma.reshape(1, -1, 1, 1) \
        + beta.reshape(1, -1, 1, 1)


if __name__ == "__main__":
    # Small shapes consistent with the module's NCHW conv: (N, C_in, T, V)
    N, C_in, C_out, T, V = 2, 4, 8, 16, 16
    K, stride = 5, 1

    key = jax.random.PRNGKey(0)
    kx, kw = jax.random.split(key)

    x = jax.random.normal(kx, (N, C_in, T, V), dtype=jnp.float32)

    # Deterministic parameter init mirroring __init__:
    #  - conv weight: kaiming_normal_(mode='fan_out'): std = sqrt(2 / (C_out * K * 1))
    #  - conv bias: 0 ; BN weight (gamma): 1 ; BN bias (beta): 0
    fan_out = C_out * K * 1
    w_std = math.sqrt(2.0 / fan_out)
    weight = jax.random.normal(kw, (C_out, C_in, K), dtype=jnp.float32) * w_std
    bias = jnp.zeros((C_out,), jnp.float32)
    gamma = jnp.ones((C_out,), jnp.float32)
    beta = jnp.zeros((C_out,), jnp.float32)

    out = residual_conv_forward(x, weight, bias, gamma, beta,
                                kernel_size=K, stride=stride)
    out = jax.block_until_ready(out)

    ref = residual_conv_reference(x, weight, bias, gamma, beta,
                                  kernel_size=K, stride=stride)
    ref = jax.block_until_ready(ref)

    assert out.shape == (N, C_out, T, V), out.shape
    assert jnp.allclose(out, ref, rtol=1e-4, atol=1e-4), \
        float(jnp.max(jnp.abs(out - ref)))

    print("KERNEL_OK")
</pallas_src>

<mosaic_0001>
module attributes {stable_mosaic.version = 11 : i64} {
  func.func @_residual_conv_bn_kernel(%arg0: i32, %arg1: memref<20x512xf32, #tpu.memory_space<vmem>>, %arg2: memref<8x20xf32, #tpu.memory_space<vmem>>, %arg3: memref<8x1xf32, #tpu.memory_space<vmem>>, %arg4: memref<8x1xf32, #tpu.memory_space<vmem>>, %arg5: memref<8x512xf32, #tpu.memory_space<vmem>>) attributes {dimension_semantics = [#tpu.dimension_semantics<parallel>], iteration_bounds = array<i64: 1>, scalar_prefetch = 0 : i64, scratch_operands = 0 : i64, tpu.core_type = #tpu.core_type<tc>, window_params = [{pipeline_mode = #tpu.pipeline_mode<synchronous>, transform_indices = @transform_0, window_bounds = array<i64: 20, 512>}, {transform_indices = @transform_1, window_bounds = array<i64: 8, 20>}, {transform_indices = @transform_2, window_bounds = array<i64: 8, 1>}, {transform_indices = @transform_3, window_bounds = array<i64: 8, 1>}, {transform_indices = @transform_4, window_bounds = array<i64: 8, 512>}]} {
    %c0 = arith.constant 0 : index
    %c0_0 = arith.constant 0 : index
    %0 = vector.load %arg2[%c0, %c0_0] : memref<8x20xf32, #tpu.memory_space<vmem>>, vector<8x20xf32>
    %c0_1 = arith.constant 0 : index
    %c0_2 = arith.constant 0 : index
    %1 = vector.load %arg1[%c0_1, %c0_2] : memref<20x512xf32, #tpu.memory_space<vmem>>, vector<20x512xf32>
    %cst = arith.constant dense<0.000000e+00> : vector<8x512xf32>
    %2 = tpu.matmul %0, %1, %cst {dimension_numbers = #tpu.dot_dimension_numbers<[1], [0], [0], [1], [0, 0, 1, 1], [], []>} : vector<8x20xf32>, vector<20x512xf32>, vector<8x512xf32> -> vector<8x512xf32>
    %cst_3 = arith.constant dense<0.000000e+00> : vector<8xf32>
    %3 = vector.multi_reduction <add>, %2, %cst_3 [1] : vector<8x512xf32> to vector<8xf32>
    %4 = vector.shape_cast %3 : vector<8xf32> to vector<8x1xf32>
    %cst_4 = arith.constant 0.001953125 : f32
    %5 = vector.broadcast %cst_4 : f32 to vector<8x1xf32>
    %6 = arith.mulf %4, %5 : vector<8x1xf32>
    %7 = vector.broadcast %6 : vector<8x1xf32> to vector<8x512xf32>
    %8 = arith.subf %2, %7 : vector<8x512xf32>
    %9 = arith.mulf %8, %8 : vector<8x512xf32>
    %cst_5 = arith.constant dense<0.000000e+00> : vector<8xf32>
    %10 = vector.multi_reduction <add>, %9, %cst_5 [1] : vector<8x512xf32> to vector<8xf32>
    %11 = vector.shape_cast %10 : vector<8xf32> to vector<8x1xf32>
    %cst_6 = arith.constant 0.001953125 : f32
    %12 = vector.broadcast %cst_6 : f32 to vector<8x1xf32>
    %13 = arith.mulf %11, %12 : vector<8x1xf32>
    %cst_7 = arith.constant 9.99999974E-6 : f32
    %14 = vector.broadcast %cst_7 : f32 to vector<8x1xf32>
    %15 = arith.addf %13, %14 : vector<8x1xf32>
    %16 = math.rsqrt %15 : vector<8x1xf32>
    %17 = vector.broadcast %16 : vector<8x1xf32> to vector<8x512xf32>
    %18 = arith.mulf %8, %17 : vector<8x512xf32>
    %c0_8 = arith.constant 0 : index
    %c0_9 = arith.constant 0 : index
    %19 = vector.load %arg3[%c0_8, %c0_9] : memref<8x1xf32, #tpu.memory_space<vmem>>, vector<8x1xf32>
    %20 = vector.broadcast %19 : vector<8x1xf32> to vector<8x512xf32>
    %21 = arith.mulf %18, %20 : vector<8x512xf32>
    %c0_10 = arith.constant 0 : index
    %c0_11 = arith.constant 0 : index
    %22 = vector.load %arg4[%c0_10, %c0_11] : memref<8x1xf32, #tpu.memory_space<vmem>>, vector<8x1xf32>
    %23 = vector.broadcast %22 : vector<8x1xf32> to vector<8x512xf32>
    %24 = arith.addf %21, %23 : vector<8x512xf32>
    %c0_12 = arith.constant 0 : index
    %c0_13 = arith.constant 0 : index
    %25 = vector.load %arg5[%c0_12, %c0_13] : memref<8x512xf32, #tpu.memory_space<vmem>>, vector<8x512xf32>
    tpu.vector_store %arg5[%c0_12, %c0_13], %24 {strides = array<i32>} : memref<8x512xf32, #tpu.memory_space<vmem>>, vector<8x512xf32>,
    return
  }
  func.func @transform_0(%arg0: i32) -> (i32, i32) {
    %c0_i32 = arith.constant 0 : i32
    %c0_i32_0 = arith.constant 0 : i32
    %c0_i32_1 = arith.constant 0 : i32
    return %c0_i32, %c0_i32_0 : i32, i32
  }
  func.func @transform_1(%arg0: i32) -> (i32, i32) {
    %c0_i32 = arith.constant 0 : i32
    %c0_i32_0 = arith.constant 0 : i32
    return %arg0, %c0_i32 : i32, i32
  }
  func.func @transform_2(%arg0: i32) -> (i32, i32) {
    %c0_i32 = arith.constant 0 : i32
    %c0_i32_0 = arith.constant 0 : i32
    return %arg0, %c0_i32 : i32, i32
  }
  func.func @transform_3(%arg0: i32) -> (i32, i32) {
    %c0_i32 = arith.constant 0 : i32
    %c0_i32_0 = arith.constant 0 : i32
    return %arg0, %c0_i32 : i32, i32
  }
  func.func @transform_4(%arg0: i32) -> (i32, i32) {
    %c0_i32 = arith.constant 0 : i32
    %c0_i32_0 = arith.constant 0 : i32
    return %arg0, %c0_i32 : i32, i32
  }
}

</mosaic_0001>

<llo_original>
// kernel: tpu_custom_call.1
$region0: #{tpu_custom_call.1}
  #allocation0 [shape = 'u32[]', space=smem, size = 0x4, offset = 0x4, fixed_abs, tag = 'smem constant byte address 0x4 - core index']
  #allocation1 [shape = 'u32[144,128]{1,0:T(1,128)}', space=vmem, size = 0x12000, scoped, tag = 'internal scratch']
  %s0 = inlined_call_operand.hbm [shape: f32[20,512], index: 0, kind: input, shape index: {}]
  %s1 = inlined_call_operand.vmem [shape: f32[8,20], index: 1, kind: input, shape index: {}]
  %s2 = inlined_call_operand.vmem [shape: f32[8,1], index: 2, kind: input, shape index: {}]
  %s3 = inlined_call_operand.vmem [shape: f32[8,1], index: 3, kind: input, shape index: {}]
  %s4 = inlined_call_operand.hbm [shape: f32[8,512], index: 4, kind: output, shape index: {}]
  %s5 = sld [smem:[#allocation0]]
  $region30: #{tpu_custom_call.1} parent=0
    _
  %s7 = ssub.s32 1, %s5
  %s8 = scalar_select 0, %s7, %s5
  $region1: #{tpu_custom_call.1} parent=0
    #allocation2 [shape = 'u8[49152]{0}', space=vmem, size = 0xc000, scoped, tag = 'input window, operand 0, single buffered']
    #allocation3 [shape = 's32[1]{0}', space=sflag, size = 0x4, scoped, tag = 'scoped memory for tpu_custom_call.1']
    #allocation4 [shape = 's32[1]{0}', space=sflag, size = 0x4, scoped, tag = 'scoped memory for tpu_custom_call.1']
    #allocation5 [shape = 'u8[16384]{0}', space=vmem, size = 0x4000, scoped, tag = 'output window, operand 0, single buffered']
    %9 = vsyncpa [#allocation3], 0
    %10 = vsyncpa [#allocation4], 0
    // Predicated region
    $region2: #{tpu_custom_call.1} parent=1 // pred_check
      _
    $region3: #{tpu_custom_call.1} parent=1 // pred_check_branch
      %12 = sbr.rel (0) target = $region5
    $region4: #{tpu_custom_call.1} parent=1 // pred_region
      %s14 = ssub.s32 1536, 1536
      %15 = vsyncadd [#allocation3], %s14
      %s16 = sshll.u32 [#allocation2], 4
      %s17 = int_to_ptr.vmem [resolvable:$true] %s16
      %22 = dma.hbm_to_vmem [thread:$0]  %s0, 1536, %s17, [#allocation3], 512, 512, 32
    $region5: #{tpu_custom_call.1} parent=1 // pred_fallthru
      _
    // Predicated region
    $region6: #{tpu_custom_call.1} parent=1 // pred_check
      _
    $region7: #{tpu_custom_call.1} parent=1 // pred_check_branch
      %24 = sbr.rel (0) target = $region9
    $region8: #{tpu_custom_call.1} parent=1 // pred_region
      _
    $region9: #{tpu_custom_call.1} parent=1 // pred_fallthru
      _
    // Predicated region
    $region10: #{tpu_custom_call.1} parent=1 // pred_check
      _
    $region11: #{tpu_custom_call.1} parent=1 // pred_check_branch
      %26 = sbr.rel (0) target = $region13
    $region12: #{tpu_custom_call.1} parent=1 // pred_region
      _
    $region13: #{tpu_custom_call.1} parent=1 // pred_fallthru
      _
    // Predicated region
    $region14: #{tpu_custom_call.1} parent=1 // pred_check
      _
    $region15: #{tpu_custom_call.1} parent=1 // pred_check_branch
      %28 = sbr.rel (0) target = $region17
    $region16: #{tpu_custom_call.1} parent=1 // pred_region
      _
    $region17: #{tpu_custom_call.1} parent=1 // pred_fallthru
      _
    // Predicated region
    $region18: #{tpu_custom_call.1} parent=1 // pred_check
      _
    $region19: #{tpu_custom_call.1} parent=1 // pred_check_branch
      %30 = sbr.rel (0) target = $region21
    $region20: #{tpu_custom_call.1} parent=1 // pred_region
      %31 = dma.done [#allocation3], 1536
    $region21: #{tpu_custom_call.1} parent=1 // pred_fallthru
      _
    %v32 = vld [vmem:[%s1] sm:$0xff]
    %v33 = vld [vmem:[#allocation2] sm:$0xff]
    %v34 = vld [vmem:[#allocation2 + $0x8] sm:$0xff]
    %v35 = vld [vmem:[#allocation2 + $0x10] sm:$0xff]
    %v36 = vld [vmem:[#allocation2 + $0x18] sm:$0xff]
    %v37 = vld [vmem:[#allocation2 + $0x20] sm:$0xff]
    %v38 = vld [vmem:[#allocation2 + $0x28] sm:$0xff]
    %v39 = vld [vmem:[#allocation2 + $0x30] sm:$0xff]
    %v40 = vld [vmem:[#allocation2 + $0x38] sm:$0xff]
    %v41 = vld [vmem:[#allocation2 + $0x40] sm:$0xf]
    %v42 = vld [vmem:[#allocation2 + $0x48] sm:$0xf]
    %v43 = vld [vmem:[#allocation2 + $0x50] sm:$0xf]
    %v44 = vld [vmem:[#allocation2 + $0x58] sm:$0xf]
    %vm45 = vcmask 162816
    %v47 = vsel %vm45, %v32, 0
    %vm49 = vcmask 1043456
    %v51 = vsel %vm49, %v41, 0
    %v54 = vsel %vm49, %v42, 0
    %v57 = vsel %vm49, %v43, 0
    %v60 = vsel %vm49, %v44, 0
    %62 = vmatprep.subr.mxu0 %v34
    %63 = vmatpush1.msra.mxu0 %v33
    %64 = vmatprep.subr.mxu0 %v38
    %65 = vmatpush1.msra.mxu0 %v37
    %66 = vmatprep.subr.mxu0 %v54
    %67 = vmatpush1.msra.mxu0 %v51
    %68 = vmatprep.subr.mxu0 0.0
    %69 = vmatpush1.msra.mxu0 0.0
    %70 = vmatprep.subr.mxu0 0.0
    %71 = vmatpush1.msra.mxu0 0.0
    %72 = vmatprep.subr.mxu0 0.0
    %73 = vmatpush1.msra.mxu0 0.0
    %74 = vmatprep.subr.mxu0 0.0
    %75 = vmatpush1.msra.mxu0 0.0
    %76 = vmatprep.subr.mxu0 0.0
    %77 = vmatpush1.msra.mxu0 0.0
    %78 = vmatprep.subr.mxu0 0.0
    %79 = vmatpush1.msra.mxu0 0.0
    %80 = vmatprep.subr.mxu0 0.0
    %81 = vmatpush1.msra.mxu0 0.0
    %82 = vmatprep.subr.mxu0 0.0
    %83 = vmatpush1.msra.mxu0 0.0
    %84 = vmatprep.subr.mxu0 0.0
    %85 = vmatpush1.msra.mxu0 0.0
    %86 = vmatprep.subr.mxu0 0.0
    %87 = vmatpush1.msra.mxu0 0.0
    %88 = vmatprep.subr.mxu0 0.0
    %89 = vmatpush1.msra.mxu0 0.0
    %90 = vmatprep.subr.mxu0 0.0
    %91 = vmatpush1.msra.mxu0 0.0
    %92 = vmatprep.subr.mxu0 0.0
    %93 = vmatpush1.msra.mxu0 0.0
    %94 = vmatprep.subr.mxu0 0.0
    %95 = vmatpush1.msra.mxu0 0.0
    %96 = vmatprep.subr.mxu0 0.0
    %97 = vmatpush1.msra.mxu0 0.0
    %98 = vmatprep.subr.mxu0 0.0
    %99 = vmatpush1.msra.mxu0 0.0
    %100 = vmatprep.subr.mxu0 0.0
    %101 = vmatpush1.msra.mxu0 0.0
    %102 = vmatprep.subr.mxu0 0.0
    %103 = vmatpush1.msra.mxu0 0.0
    %104 = vmatprep.subr.mxu0 0.0
    %105 = vmatpush1.msra.mxu0 0.0
    %106 = vmatprep.subr.mxu0 0.0
    %107 = vmatpush1.msra.mxu0 0.0
    %108 = vmatprep.subr.mxu0 0.0
    %109 = vmatpush1.msra.mxu0 0.0
    %110 = vmatprep.subr.mxu0 0.0
    %111 = vmatpush1.msra.mxu0 0.0
    %112 = vmatprep.subr.mxu0 0.0
    %113 = vmatpush1.msra.mxu0 0.0
    %114 = vmatprep.subr.mxu0 0.0
    %115 = vmatpush1.msra.mxu0 0.0
    %116 = vmatprep.subr.mxu0 0.0
    %117 = vmatpush1.msra.mxu0 0.0
    %118 = vmatprep.subr.mxu0 0.0
    %119 = vmatpush1.msra.mxu0 0.0
    %120 = vmatprep.subr.mxu0 0.0
    %121 = vmatpush1.msra.mxu0 0.0
    %122 = vmatprep.subr.mxu0 0.0
    %123 = vmatpush1.msra.mxu0 0.0
    %124 = vmatprep.subr.mxu0 0.0
    %125 = vmatpush1.msra.mxu0 0.0
    %126 = vmatprep.mubr.f32.mxu0 0.0
    %127 = vmatmul.mubr.f32.gmra.mrb[0].mxu0 %v47
    %v128 = vpop.f32.mrb[0].mxu0
    %v129 = vadd.f32 0.0, %v128
    %v130 = vpop.f32.mrb[0].mxu0
    %v131 = vadd.f32 0.0, %v130
    %132 = vdwg.mxu0
    %133 = vmatprep.subr.mxu0 %v36
    %134 = vmatpush1.msra.mxu0 %v35
    %135 = vmatprep.subr.mxu0 %v40
    %136 = vmatpush1.msra.mxu0 %v39
    %137 = vmatprep.subr.mxu0 %v60
    %138 = vmatpush1.msra.mxu0 %v57
    %139 = vmatprep.subr.mxu0 0.0
    %140 = vmatpush1.msra.mxu0 0.0
    %141 = vmatprep.subr.mxu0 0.0
    %142 = vmatpush1.msra.mxu0 0.0
    %143 = vmatprep.subr.mxu0 0.0
    %144 = vmatpush1.msra.mxu0 0.0
    %145 = vmatprep.subr.mxu0 0.0
    %146 = vmatpush1.msra.mxu0 0.0
    %147 = vmatprep.subr.mxu0 0.0
    %148 = vmatpush1.msra.mxu0 0.0
    %149 = vmatprep.subr.mxu0 0.0
    %150 = vmatpush1.msra.mxu0 0.0
    %151 = vmatprep.subr.mxu0 0.0
    %152 = vmatpush1.msra.mxu0 0.0
    %153 = vmatprep.subr.mxu0 0.0
    %154 = vmatpush1.msra.mxu0 0.0
    %155 = vmatprep.subr.mxu0 0.0
    %156 = vmatpush1.msra.mxu0 0.0
    %157 = vmatprep.subr.mxu0 0.0
    %158 = vmatpush1.msra.mxu0 0.0
    %159 = vmatprep.subr.mxu0 0.0
    %160 = vmatpush1.msra.mxu0 0.0
    %161 = vmatprep.subr.mxu0 0.0
    %162 = vmatpush1.msra.mxu0 0.0
    %163 = vmatprep.subr.mxu0 0.0
    %164 = vmatpush1.msra.mxu0 0.0
    %165 = vmatprep.subr.mxu0 0.0
    %166 = vmatpush1.msra.mxu0 0.0
    %167 = vmatprep.subr.mxu0 0.0
    %168 = vmatpush1.msra.mxu0 0.0
    %169 = vmatprep.subr.mxu0 0.0
    %170 = vmatpush1.msra.mxu0 0.0
    %171 = vmatprep.subr.mxu0 0.0
    %172 = vmatpush1.msra.mxu0 0.0
    %173 = vmatprep.subr.mxu0 0.0
    %174 = vmatpush1.msra.mxu0 0.0
    %175 = vmatprep.subr.mxu0 0.0
    %176 = vmatpush1.msra.mxu0 0.0
    %177 = vmatprep.subr.mxu0 0.0
    %178 = vmatpush1.msra.mxu0 0.0
    %179 = vmatprep.subr.mxu0 0.0
    %180 = vmatpush1.msra.mxu0 0.0
    %181 = vmatprep.subr.mxu0 0.0
    %182 = vmatpush1.msra.mxu0 0.0
    %183 = vmatprep.subr.mxu0 0.0
    %184 = vmatpush1.msra.mxu0 0.0
    %185 = vmatprep.subr.mxu0 0.0
    %186 = vmatpush1.msra.mxu0 0.0
    %187 = vmatprep.subr.mxu0 0.0
    %188 = vmatpush1.msra.mxu0 0.0
    %189 = vmatprep.subr.mxu0 0.0
    %190 = vmatpush1.msra.mxu0 0.0
    %191 = vmatprep.subr.mxu0 0.0
    %192 = vmatpush1.msra.mxu0 0.0
    %193 = vmatprep.subr.mxu0 0.0
    %194 = vmatpush1.msra.mxu0 0.0
    %195 = vmatprep.subr.mxu0 0.0
    %196 = vmatpush1.msra.mxu0 0.0
    %197 = vmatprep.mubr.f32.mxu0 0.0
    %198 = vmatmul.mubr.f32.gmra.mrb[0].mxu0 %v47
    %v199 = vpop.f32.mrb[0].mxu0
    %v200 = vadd.f32 0.0, %v199
    %v201 = vpop.f32.mrb[0].mxu0
    %v202 = vadd.f32 0.0, %v201
    %203 = vdwg.mxu0
    %v204 = vadd.f32 %v129, %v131
    %v205 = vadd.f32 %v204, %v200
    %v206 = vadd.f32 %v205, %v202
    %207 = vadd.xlane.f32.xlu0 %v206
    %v208 = vpop.xlane.xlu0 %207
    %v209 = vmul.f32 %v208, 0.001953125
    %v210 = vsub.f32 %v129, %v209
    %v211 = vsub.f32 %v131, %v209
    %v212 = vsub.f32 %v200, %v209
    %v213 = vsub.f32 %v202, %v209
    %v214 = vmul.f32 %v210, %v210
    %v215 = vmul.f32 %v211, %v211
    %v216 = vmul.f32 %v212, %v212
    %v217 = vmul.f32 %v213, %v213
    %v218 = vadd.f32 %v214, %v215
    %v219 = vadd.f32 %v218, %v216
    %v220 = vadd.f32 %v219, %v217
    %221 = vadd.xlane.f32.xlu0 %v220
    %v222 = vpop.xlane.xlu0 %221
    %v223 = vmul.f32 %v222, 0.001953125
    %v224 = vadd.f32 %v223, 1e-05
    %v225 = vrsqrt.pop %v224
    %v226 = vmul.f32 %v210, %v225
    %v227 = vmul.f32 %v211, %v225
    %v228 = vmul.f32 %v212, %v225
    %v229 = vmul.f32 %v213, %v225
    %v230 = vld [vmem:[%s2] sm:$0xff]
    %232 = vset.pattern.permute.xlu0 0
    %233 = vperm.xlu0 %232, %v230
    %v234 = vpop.permute.xlu0 %233
    %v236 = vmul.f32 %v226, %v234
    %v237 = vmul.f32 %v227, %v234
    %v238 = vmul.f32 %v228, %v234
    %v239 = vmul.f32 %v229, %v234
    %v240 = vld [vmem:[%s3] sm:$0xff]
    %242 = vset.pattern.permute.xlu0 0
    %243 = vperm.xlu0 %242, %v240
    %v244 = vpop.permute.xlu0 %243
    %v246 = vadd.f32 %v236, %v244
    %v247 = vadd.f32 %v237, %v244
    %v248 = vadd.f32 %v238, %v244
    %v249 = vadd.f32 %v239, %v244
    %250 = vst [vmem:[#allocation5] sm:$0xff] %v246
    %251 = vst [vmem:[#allocation5 + $0x8] sm:$0xff] %v247
    %252 = vst [vmem:[#allocation5 + $0x10] sm:$0xff] %v248
    %253 = vst [vmem:[#allocation5 + $0x18] sm:$0xff] %v249
    // Predicated region
    $region22: #{tpu_custom_call.1} parent=1 // pred_check
      _
    $region23: #{tpu_custom_call.1} parent=1 // pred_check_branch
      %255 = sbr.rel (0) target = $region25
    $region24: #{tpu_custom_call.1} parent=1 // pred_region
      %s257 = ssub.s32 512, 512
      %258 = vsyncadd [#allocation4], %s257
      %s260 = sshll.u32 [#allocation5], 4
      %s261 = int_to_ptr.vmem [resolvable:$true] %s260
      %263 = dma.vmem_to_hbm [thread:$0]  %s261, 512, %s4, [#allocation4]
    $region25: #{tpu_custom_call.1} parent=1 // pred_fallthru
      _
    // Predicated region
    $region26: #{tpu_custom_call.1} parent=1 // pred_check
      _
    $region27: #{tpu_custom_call.1} parent=1 // pred_check_branch
      %265 = sbr.rel (0) target = $region29
    $region28: #{tpu_custom_call.1} parent=1 // pred_region
      %266 = dma.done [#allocation4], 512
    $region29: #{tpu_custom_call.1} parent=1 // pred_fallthru
      _
    %267 = vsyncpa [#allocation3], 1
    %268 = vsyncpa [#allocation4], 1

</llo_original>
